<compile_context>
chip_gen: v6e
topology: v6e:2x2x1
jax: 0.10.0
libtpu: 0.0.40
codegen_flags: <defaults>
</compile_context>

<pallas_src>
import functools

import jax
import jax.numpy as jnp
from jax.experimental import pallas as pl
from jax.experimental.pallas import tpu as pltpu

_EPS = 1e-5           # nn.BatchNorm2d default
_SLOPE = 0.1          # nn.LeakyReLU(0.1)
_VMEM_LIMIT = 32 * 1024 * 1024    # explicit scoped-VMEM budget (safe v5e..v7x)
_FUSED_Y_BYTES = 8 * 1024 * 1024  # keep conv activations resident up to this


def _round8(c):
    return max(8, -(-c // 8) * 8)


def _pick_image_batch(N, C, Cp, HW):
    """Images per grid step: large enough to amortize per-step overhead, small
    enough that the K-stacked staging buffer and (double-buffered) input block
    stay well inside scoped VMEM, and keeping >= 2 grid steps when possible so
    the 'parallel' fallback grid can be sharded across both v7x TensorCores."""
    best = 1
    for b in range(1, N + 1):
        if N % b:
            continue
        if 9 * Cp * b * HW * 4 > (2 << 20):     # staging RHS cap (~2 MiB)
            continue
        if b * C * HW * 4 > (1 << 20):          # per-step input block cap (~1 MiB)
            continue
        if N >= 2 and N // b < 2:               # keep at least 2 grid steps
            continue
        best = b
    return best


def _stage_conv_matmul(x_ref, w_ref, m_ref, rhs_ref, *, B, H, W, C, Cp):
    """Stage the 9 lane-rotated, masked taps of each image into the K-stacked
    (9*Cp, B*HW) RHS scratch, then issue ONE MXU matmul:
        (Cp, 9*Cp) @ (9*Cp, B*HW) -> (Cp, B*HW)   (f32 accumulate)."""
    HW = H * W
    zpad = jnp.zeros((Cp - C, HW), jnp.float32) if Cp != C else None  # hoisted
    for b in range(B):
        xb = x_ref[b]                                   # (C, HW)
        for t in range(9):
            kh, kw = divmod(t, 3)
            # staged[q] = x[q + s] with s = (kh-1)*W + (kw-1)  (jnp.roll semantics)
            shift = ((1 - kh) * W + (1 - kw)) % HW
            rot = pltpu.roll(xb, shift, 1) if shift else xb
            blk = rot * m_ref[t:t + 1, :]               # zero out-of-image taps
            if zpad is not None:
                # keep padded input-channel rows of the RHS zero (aligned full-tile store)
                blk = jnp.concatenate([blk, zpad], axis=0)   # (Cp, HW)
            rhs_ref[t * Cp:(t + 1) * Cp, b * HW:(b + 1) * HW] = blk
    return jnp.dot(w_ref[...], rhs_ref[...], preferred_element_type=jnp.float32)


# --------------------------- fused single-pass path ---------------------------
def _fused_kernel(x_ref, w_ref, m_ref, g_ref, b_ref, o_ref, rhs_ref, sum_ref,
                  *, B, H, W, C, Cp, n_steps, n_total):
    i = pl.program_id(0)
    HW = H * W

    conv = _stage_conv_matmul(x_ref, w_ref, m_ref, rhs_ref,
                              B=B, H=H, W=W, C=C, Cp=Cp)          # (Cp, B*HW)

    # park the un-normalized conv activations in the resident output block
    for b in range(B):
        o_ref[i * B + b] = conv[:C, b * HW:(b + 1) * HW]

    # accumulate per-channel sums for the batch mean
    cs = jnp.sum(conv[:C], axis=1, keepdims=True)                 # (C, 1)

    @pl.when(i == 0)
    def _():
        sum_ref[...] = cs

    @pl.when(i > 0)
    def _():
        sum_ref[...] = sum_ref[...] + cs

    # last step: batch stats -> folded BN scale/shift, apply + LeakyReLU in place
    @pl.when(i == n_steps - 1)
    def _():
        inv_n = 1.0 / float(n_total)
        mean = sum_ref[...] * inv_n                               # (C, 1)
        # two-pass variance around the exact mean (data is VMEM-resident, so the
        # extra pass is cheap and avoids E[x^2]-E[x]^2 cancellation)
        ssd = jnp.zeros((C, 1), jnp.float32)
        for k in range(n_steps):
            d = o_ref[k * B:(k + 1) * B] - mean                   # (B, C, HW)
            ssd = ssd + jnp.sum(jnp.sum(d * d, axis=0), axis=1, keepdims=True)
        var = ssd * inv_n
        scale = g_ref[...] * jax.lax.rsqrt(var + _EPS)            # (C, 1)
        shift = b_ref[...] - mean * scale
        for k in range(n_steps):
            z = o_ref[k * B:(k + 1) * B] * scale + shift
            o_ref[k * B:(k + 1) * B] = jnp.where(z >= 0, z, _SLOPE * z)


# ------------------------------ two-pass fallback ------------------------------
def _conv_stats_kernel(x_ref, w_ref, m_ref, y_ref, sum_ref, ssq_ref, rhs_ref,
                       *, B, H, W, C, Cp):
    HW = H * W
    conv = _stage_conv_matmul(x_ref, w_ref, m_ref, rhs_ref,
                              B=B, H=H, W=W, C=C, Cp=Cp)          # (Cp, B*HW)
    for b in range(B):
        y_ref[b] = conv[:C, b * HW:(b + 1) * HW]
    sum_ref[0] = jnp.sum(conv[:C], axis=1, keepdims=True)
    ssq_ref[0] = jnp.sum(conv[:C] * conv[:C], axis=1, keepdims=True)


def _bn_lrelu_kernel(y_ref, sc_ref, sh_ref, o_ref):
    z = y_ref[...] * sc_ref[...] + sh_ref[...]
    o_ref[...] = jnp.where(z >= 0, z, _SLOPE * z)


@jax.jit
def basic_block_forward(x_nchw, conv_w, conv_b, gamma, beta):
    """x_nchw: (N, C, H, W) f32; conv_w: (C, C, 3, 3). Returns (N, C, H, W).

    NOTE: conv_b is accepted for interface fidelity but is NOT used: a per-channel
    constant added before batch-stat BatchNorm is exactly absorbed by the mean
    subtraction (it would only matter for the running-stat buffers, see TODO)."""
    del conv_b
    N, C, H, W = x_nchw.shape
    HW = H * W
    Cp = _round8(C)
    f32 = jnp.float32

    # --- cheap layout prep: no padding, no transposes, no extra HBM passes ---
    x = x_nchw.astype(f32).reshape(N, C, HW)

    w = conv_w.astype(f32)
    if Cp != C:
        w = jnp.pad(w, ((0, Cp - C), (0, Cp - C), (0, 0), (0, 0)))
    # K-stacked LHS: w_k[co, (kh*3+kw)*Cp + ci] = w[co, ci, kh, kw]
    w_k = jnp.transpose(w, (0, 2, 3, 1)).reshape(Cp, 9 * Cp)

    # 9 tap validity masks: zero where the shifted source pixel is outside the image
    row = jnp.arange(HW, dtype=jnp.int32) // W
    col = jnp.arange(HW, dtype=jnp.int32) % W
    tap_masks = []
    for kh in range(3):
        for kw in range(3):
            dr, dc = kh - 1, kw - 1
            ok = ((row + dr >= 0) & (row + dr < H) &
                  (col + dc >= 0) & (col + dc < W))
            tap_masks.append(ok)
    masks = jnp.stack(tap_masks).astype(f32)                      # (9, HW)

    g2 = gamma.astype(f32).reshape(C, 1)
    b2 = beta.astype(f32).reshape(C, 1)

    B = _pick_image_batch(N, C, Cp, HW)
    n_steps = N // B

    if N * C * HW * 4 <= _FUSED_Y_BYTES:
        # ---------------- fused: conv + BN(batch stats) + LeakyReLU ----------------
        kernel = functools.partial(_fused_kernel, B=B, H=H, W=W, C=C, Cp=Cp,
                                   n_steps=n_steps, n_total=N * HW)
        out_flat = pl.pallas_call(
            kernel,
            grid=(n_steps,),
            in_specs=[
                pl.BlockSpec((B, C, HW), lambda i: (i, 0, 0)),    # x image batch
                pl.BlockSpec((Cp, 9 * Cp), lambda i: (0, 0)),     # K-stacked weights (resident)
                pl.BlockSpec((9, HW), lambda i: (0, 0)),          # tap masks (resident)
                pl.BlockSpec((C, 1), lambda i: (0, 0)),           # gamma (resident)
                pl.BlockSpec((C, 1), lambda i: (0, 0)),           # beta (resident)
            ],
            out_specs=pl.BlockSpec((N, C, HW), lambda i: (0, 0, 0)),  # VMEM-resident
            out_shape=jax.ShapeDtypeStruct((N, C, HW), f32),
            scratch_shapes=[
                pltpu.VMEM((9 * Cp, B * HW), f32),                # K-stacked conv RHS
                pltpu.VMEM((C, 1), f32),                          # per-channel sum
            ],
            compiler_params=pltpu.CompilerParams(
                dimension_semantics=("arbitrary",),
                vmem_limit_bytes=_VMEM_LIMIT),
            cost_estimate=pl.CostEstimate(
                flops=2 * N * HW * Cp * 9 * Cp + 10 * N * C * HW,
                transcendentals=C,
                bytes_accessed=4 * (2 * N * C * HW + 9 * Cp * Cp + 9 * HW + 2 * C)),
        )(x, w_k, masks, g2, b2)
    else:
        # ------------- pass 1: conv + per-step partial BN statistics -------------
        conv_kernel = functools.partial(_conv_stats_kernel,
                                        B=B, H=H, W=W, C=C, Cp=Cp)
        y_flat, ssum, ssq = pl.pallas_call(
            conv_kernel,
            grid=(n_steps,),
            in_specs=[
                pl.BlockSpec((B, C, HW), lambda i: (i, 0, 0)),
                pl.BlockSpec((Cp, 9 * Cp), lambda i: (0, 0)),
                pl.BlockSpec((9, HW), lambda i: (0, 0)),
            ],
            out_specs=(
                pl.BlockSpec((B, C, HW), lambda i: (i, 0, 0)),
                pl.BlockSpec((1, C, 1), lambda i: (i, 0, 0)),
                pl.BlockSpec((1, C, 1), lambda i: (i, 0, 0)),
            ),
            out_shape=(
                jax.ShapeDtypeStruct((N, C, HW), f32),
                jax.ShapeDtypeStruct((n_steps, C, 1), f32),
                jax.ShapeDtypeStruct((n_steps, C, 1), f32),
            ),
            scratch_shapes=[pltpu.VMEM((9 * Cp, B * HW), f32)],
            compiler_params=pltpu.CompilerParams(
                dimension_semantics=("parallel",),
                vmem_limit_bytes=_VMEM_LIMIT),
            cost_estimate=pl.CostEstimate(
                flops=2 * N * HW * Cp * 9 * Cp,
                transcendentals=0,
                bytes_accessed=4 * (2 * N * C * HW + 9 * Cp * Cp + 9 * HW
                                    + 2 * n_steps * C)),
        )(x, w_k, masks)

        # ---- finalize batch stats -> one scale/shift per channel (tiny glue) ----
        total = float(N * HW)
        mean = jnp.sum(ssum, axis=0) / total                      # (C, 1)
        # TODO(synk): single-pass E[y^2]-E[y]^2 can cancel for |mean| >> std; use a
        # chunked two-pass / Welford combine if tighter tolerance is needed here.
        var = jnp.maximum(jnp.sum(ssq, axis=0) / total - mean * mean, 0.0)
        scale = g2 * jax.lax.rsqrt(var + _EPS)
        shift = b2 - mean * scale

        # --------- pass 2: folded BN + LeakyReLU, aliased in place on y ---------
        out_flat = pl.pallas_call(
            _bn_lrelu_kernel,
            grid=(n_steps,),
            in_specs=[
                pl.BlockSpec((B, C, HW), lambda i: (i, 0, 0)),
                pl.BlockSpec((C, 1), lambda i: (0, 0)),
                pl.BlockSpec((C, 1), lambda i: (0, 0)),
            ],
            out_specs=pl.BlockSpec((B, C, HW), lambda i: (i, 0, 0)),
            out_shape=jax.ShapeDtypeStruct((N, C, HW), f32),
            input_output_aliases={0: 0},
            compiler_params=pltpu.CompilerParams(
                dimension_semantics=("parallel",),
                vmem_limit_bytes=_VMEM_LIMIT),
            cost_estimate=pl.CostEstimate(
                flops=4 * N * C * HW,
                transcendentals=0,
                bytes_accessed=4 * 2 * N * C * HW),
        )(y_flat, scale, shift)

    return out_flat.reshape(N, C, H, W)


def reference_forward(x_nchw, conv_w, conv_b, gamma, beta):
    """Pure-JAX reference (lax conv + batch-stats BN + leaky relu)."""
    y = jax.lax.conv_general_dilated(
        x_nchw, conv_w, window_strides=(1, 1), padding=((1, 1), (1, 1)),
        dimension_numbers=("NCHW", "OIHW", "NCHW"))
    y = y + conv_b.reshape(1, -1, 1, 1)
    mean = jnp.mean(y, axis=(0, 2, 3), keepdims=True)
    var = jnp.mean((y - mean) ** 2, axis=(0, 2, 3), keepdims=True)
    y_hat = (y - mean) * jax.lax.rsqrt(var + _EPS)
    z = gamma.reshape(1, -1, 1, 1) * y_hat + beta.reshape(1, -1, 1, 1)
    return jnp.where(z > 0, z, _SLOPE * z)


if __name__ == "__main__":
    N, C, H, W = 2, 4, 16, 16
    key = jax.random.PRNGKey(0)
    k_x, k_w, k_b = jax.random.split(key, 3)

    x = jax.random.normal(k_x, (N, C, H, W), dtype=jnp.float32)

    # Parameters (mirroring the PyTorch __init__):
    #   conv.weight ~ N(0, 1)  (nn.init.normal_)
    #   conv.bias   ~ U(-1/sqrt(fan_in), 1/sqrt(fan_in))  (default init)
    #   bn.weight = 1, bn.bias = 0
    conv_w = jax.random.normal(k_w, (C, C, 3, 3), dtype=jnp.float32)
    bound = 1.0 / jnp.sqrt(jnp.float32(C * 3 * 3))
    conv_b = jax.random.uniform(k_b, (C,), minval=-bound, maxval=bound,
                                dtype=jnp.float32)
    gamma = jnp.ones((C,), dtype=jnp.float32)
    beta = jnp.zeros((C,), dtype=jnp.float32)

    out = basic_block_forward(x, conv_w, conv_b, gamma, beta)
    out = jax.block_until_ready(out)

    ref = reference_forward(x, conv_w, conv_b, gamma, beta)
    assert out.shape == (N, C, H, W)
    assert jnp.allclose(out, ref, rtol=1e-4, atol=1e-4), "mismatch vs reference"

    print("KERNEL_OK")
</pallas_src>

<mosaic_0001>
module attributes {stable_mosaic.version = 11 : i64} {
  func.func @_fused_kernel(%arg0: i32, %arg1: memref<1x4x256xf32, #tpu.memory_space<vmem>>, %arg2: memref<8x72xf32, #tpu.memory_space<vmem>>, %arg3: memref<9x256xf32, #tpu.memory_space<vmem>>, %arg4: memref<4x1xf32, #tpu.memory_space<vmem>>, %arg5: memref<4x1xf32, #tpu.memory_space<vmem>>, %arg6: memref<2x4x256xf32, #tpu.memory_space<vmem>>, %arg7: memref<72x256xf32, #tpu.memory_space<vmem>>, %arg8: memref<4x1xf32, #tpu.memory_space<vmem>>) attributes {dimension_semantics = [#tpu.dimension_semantics<arbitrary>], iteration_bounds = array<i64: 2>, scalar_prefetch = 0 : i64, scratch_operands = 2 : i64, tpu.core_type = #tpu.core_type<tc>, window_params = [{transform_indices = @transform_0, window_bounds = array<i64: 1, 4, 256>}, {pipeline_mode = #tpu.pipeline_mode<synchronous>, transform_indices = @transform_1, window_bounds = array<i64: 8, 72>}, {pipeline_mode = #tpu.pipeline_mode<synchronous>, transform_indices = @transform_2, window_bounds = array<i64: 9, 256>}, {pipeline_mode = #tpu.pipeline_mode<synchronous>, transform_indices = @transform_3, window_bounds = array<i64: 4, 1>}, {pipeline_mode = #tpu.pipeline_mode<synchronous>, transform_indices = @transform_4, window_bounds = array<i64: 4, 1>}, {pipeline_mode = #tpu.pipeline_mode<synchronous>, transform_indices = @transform_5, window_bounds = array<i64: 2, 4, 256>}]} {
    %cst = arith.constant 0.000000e+00 : f32
    %0 = vector.broadcast %cst : f32 to vector<4x256xf32>
    %c0 = arith.constant 0 : index
    %c0_0 = arith.constant 0 : index
    %c0_1 = arith.constant 0 : index
    %1 = vector.load %arg1[%c0, %c0_0, %c0_1] : memref<1x4x256xf32, #tpu.memory_space<vmem>>, vector<1x4x256xf32>
    %2 = vector.shape_cast %1 : vector<1x4x256xf32> to vector<4x256xf32>
    %c17_i32 = arith.constant 17 : i32
    %3 = tpu.dynamic_rotate %2 by %c17_i32 dim 1 : vector<4x256xf32>, i32 -> vector<4x256xf32>
    %c0_2 = arith.constant 0 : index
    %c0_3 = arith.constant 0 : index
    %4 = vector.load %arg3[%c0_2, %c0_3] : memref<9x256xf32, #tpu.memory_space<vmem>>, vector<1x256xf32>
    %5 = vector.broadcast %4 : vector<1x256xf32> to vector<4x256xf32>
    %6 = arith.mulf %3, %5 : vector<4x256xf32>
    %7 = tpu.concatenate %6, %0 in 0 : vector<4x256xf32>, vector<4x256xf32> -> vector<8x256xf32>
    %c0_4 = arith.constant 0 : index
    %c0_5 = arith.constant 0 : index
    %8 = vector.load %arg7[%c0_4, %c0_5] : memref<72x256xf32, #tpu.memory_space<vmem>>, vector<8x256xf32>
    tpu.vector_store %arg7[%c0_4, %c0_5], %7 {strides = array<i32>} : memref<72x256xf32, #tpu.memory_space<vmem>>, vector<8x256xf32>,
    %c16_i32 = arith.constant 16 : i32
    %9 = tpu.dynamic_rotate %2 by %c16_i32 dim 1 : vector<4x256xf32>, i32 -> vector<4x256xf32>
    %c1 = arith.constant 1 : index
    %c0_6 = arith.constant 0 : index
    %10 = vector.load %arg3[%c1, %c0_6] : memref<9x256xf32, #tpu.memory_space<vmem>>, vector<1x256xf32>
    %11 = vector.broadcast %10 : vector<1x256xf32> to vector<4x256xf32>
    %12 = arith.mulf %9, %11 : vector<4x256xf32>
    %13 = tpu.concatenate %12, %0 in 0 : vector<4x256xf32>, vector<4x256xf32> -> vector<8x256xf32>
    %c8 = arith.constant 8 : index
    %c0_7 = arith.constant 0 : index
    %14 = vector.load %arg7[%c8, %c0_7] : memref<72x256xf32, #tpu.memory_space<vmem>>, vector<8x256xf32>
    tpu.vector_store %arg7[%c8, %c0_7], %13 {strides = array<i32>} : memref<72x256xf32, #tpu.memory_space<vmem>>, vector<8x256xf32>,
    %c15_i32 = arith.constant 15 : i32
    %15 = tpu.dynamic_rotate %2 by %c15_i32 dim 1 : vector<4x256xf32>, i32 -> vector<4x256xf32>
    %c2 = arith.constant 2 : index
    %c0_8 = arith.constant 0 : index
    %16 = vector.load %arg3[%c2, %c0_8] : memref<9x256xf32, #tpu.memory_space<vmem>>, vector<1x256xf32>
    %17 = vector.broadcast %16 : vector<1x256xf32> to vector<4x256xf32>
    %18 = arith.mulf %15, %17 : vector<4x256xf32>
    %19 = tpu.concatenate %18, %0 in 0 : vector<4x256xf32>, vector<4x256xf32> -> vector<8x256xf32>
    %c16 = arith.constant 16 : index
    %c0_9 = arith.constant 0 : index
    %20 = vector.load %arg7[%c16, %c0_9] : memref<72x256xf32, #tpu.memory_space<vmem>>, vector<8x256xf32>
    tpu.vector_store %arg7[%c16, %c0_9], %19 {strides = array<i32>} : memref<72x256xf32, #tpu.memory_space<vmem>>, vector<8x256xf32>,
    %c1_i32 = arith.constant 1 : i32
    %21 = tpu.dynamic_rotate %2 by %c1_i32 dim 1 : vector<4x256xf32>, i32 -> vector<4x256xf32>
    %c3 = arith.constant 3 : index
    %c0_10 = arith.constant 0 : index
    %22 = vector.load %arg3[%c3, %c0_10] : memref<9x256xf32, #tpu.memory_space<vmem>>, vector<1x256xf32>
    %23 = vector.broadcast %22 : vector<1x256xf32> to vector<4x256xf32>
    %24 = arith.mulf %21, %23 : vector<4x256xf32>
    %25 = tpu.concatenate %24, %0 in 0 : vector<4x256xf32>, vector<4x256xf32> -> vector<8x256xf32>
    %c24 = arith.constant 24 : index
    %c0_11 = arith.constant 0 : index
    %26 = vector.load %arg7[%c24, %c0_11] : memref<72x256xf32, #tpu.memory_space<vmem>>, vector<8x256xf32>
    tpu.vector_store %arg7[%c24, %c0_11], %25 {strides = array<i32>} : memref<72x256xf32, #tpu.memory_space<vmem>>, vector<8x256xf32>,
    %c4 = arith.constant 4 : index
    %c0_12 = arith.constant 0 : index
    %27 = vector.load %arg3[%c4, %c0_12] : memref<9x256xf32, #tpu.memory_space<vmem>>, vector<1x256xf32>
    %28 = vector.broadcast %27 : vector<1x256xf32> to vector<4x256xf32>
    %29 = arith.mulf %2, %28 : vector<4x256xf32>
    %30 = tpu.concatenate %29, %0 in 0 : vector<4x256xf32>, vector<4x256xf32> -> vector<8x256xf32>
    %c32 = arith.constant 32 : index
    %c0_13 = arith.constant 0 : index
    %31 = vector.load %arg7[%c32, %c0_13] : memref<72x256xf32, #tpu.memory_space<vmem>>, vector<8x256xf32>
    tpu.vector_store %arg7[%c32, %c0_13], %30 {strides = array<i32>} : memref<72x256xf32, #tpu.memory_space<vmem>>, vector<8x256xf32>,
    %c255_i32 = arith.constant 255 : i32
    %32 = tpu.dynamic_rotate %2 by %c255_i32 dim 1 : vector<4x256xf32>, i32 -> vector<4x256xf32>
    %c5 = arith.constant 5 : index
    %c0_14 = arith.constant 0 : index
    %33 = vector.load %arg3[%c5, %c0_14] : memref<9x256xf32, #tpu.memory_space<vmem>>, vector<1x256xf32>
    %34 = vector.broadcast %33 : vector<1x256xf32> to vector<4x256xf32>
    %35 = arith.mulf %32, %34 : vector<4x256xf32>
    %36 = tpu.concatenate %35, %0 in 0 : vector<4x256xf32>, vector<4x256xf32> -> vector<8x256xf32>
    %c40 = arith.constant 40 : index
    %c0_15 = arith.constant 0 : index
    %37 = vector.load %arg7[%c40, %c0_15] : memref<72x256xf32, #tpu.memory_space<vmem>>, vector<8x256xf32>
    tpu.vector_store %arg7[%c40, %c0_15], %36 {strides = array<i32>} : memref<72x256xf32, #tpu.memory_space<vmem>>, vector<8x256xf32>,
    %c241_i32 = arith.constant 241 : i32
    %38 = tpu.dynamic_rotate %2 by %c241_i32 dim 1 : vector<4x256xf32>, i32 -> vector<4x256xf32>
    %c6 = arith.constant 6 : index
    %c0_16 = arith.constant 0 : index
    %39 = vector.load %arg3[%c6, %c0_16] : memref<9x256xf32, #tpu.memory_space<vmem>>, vector<1x256xf32>
    %40 = vector.broadcast %39 : vector<1x256xf32> to vector<4x256xf32>
    %41 = arith.mulf %38, %40 : vector<4x256xf32>
    %42 = tpu.concatenate %41, %0 in 0 : vector<4x256xf32>, vector<4x256xf32> -> vector<8x256xf32>
    %c48 = arith.constant 48 : index
    %c0_17 = arith.constant 0 : index
    %43 = vector.load %arg7[%c48, %c0_17] : memref<72x256xf32, #tpu.memory_space<vmem>>, vector<8x256xf32>
    tpu.vector_store %arg7[%c48, %c0_17], %42 {strides = array<i32>} : memref<72x256xf32, #tpu.memory_space<vmem>>, vector<8x256xf32>,
    %c240_i32 = arith.constant 240 : i32
    %44 = tpu.dynamic_rotate %2 by %c240_i32 dim 1 : vector<4x256xf32>, i32 -> vector<4x256xf32>
    %c7 = arith.constant 7 : index
    %c0_18 = arith.constant 0 : index
    %45 = vector.load %arg3[%c7, %c0_18] : memref<9x256xf32, #tpu.memory_space<vmem>>, vector<1x256xf32>
    %46 = vector.broadcast %45 : vector<1x256xf32> to vector<4x256xf32>
    %47 = arith.mulf %44, %46 : vector<4x256xf32>
    %48 = tpu.concatenate %47, %0 in 0 : vector<4x256xf32>, vector<4x256xf32> -> vector<8x256xf32>
    %c56 = arith.constant 56 : index
    %c0_19 = arith.constant 0 : index
    %49 = vector.load %arg7[%c56, %c0_19] : memref<72x256xf32, #tpu.memory_space<vmem>>, vector<8x256xf32>
    tpu.vector_store %arg7[%c56, %c0_19], %48 {strides = array<i32>} : memref<72x256xf32, #tpu.memory_space<vmem>>, vector<8x256xf32>,
    %c239_i32 = arith.constant 239 : i32
    %50 = tpu.dynamic_rotate %2 by %c239_i32 dim 1 : vector<4x256xf32>, i32 -> vector<4x256xf32>
    %c8_20 = arith.constant 8 : index
    %c0_21 = arith.constant 0 : index
    %51 = vector.load %arg3[%c8_20, %c0_21] : memref<9x256xf32, #tpu.memory_space<vmem>>, vector<1x256xf32>
    %52 = vector.broadcast %51 : vector<1x256xf32> to vector<4x256xf32>
    %53 = arith.mulf %50, %52 : vector<4x256xf32>
    %54 = tpu.concatenate %53, %0 in 0 : vector<4x256xf32>, vector<4x256xf32> -> vector<8x256xf32>
    %c64 = arith.constant 64 : index
    %c0_22 = arith.constant 0 : index
    %55 = vector.load %arg7[%c64, %c0_22] : memref<72x256xf32, #tpu.memory_space<vmem>>, vector<8x256xf32>
    tpu.vector_store %arg7[%c64, %c0_22], %54 {strides = array<i32>} : memref<72x256xf32, #tpu.memory_space<vmem>>, vector<8x256xf32>,
    %c0_23 = arith.constant 0 : index
    %c0_24 = arith.constant 0 : index
    %56 = vector.load %arg2[%c0_23, %c0_24] : memref<8x72xf32, #tpu.memory_space<vmem>>, vector<8x72xf32>
    %c0_25 = arith.constant 0 : index
    %c0_26 = arith.constant 0 : index
    %57 = vector.load %arg7[%c0_25, %c0_26] : memref<72x256xf32, #tpu.memory_space<vmem>>, vector<72x256xf32>
    %cst_27 = arith.constant dense<0.000000e+00> : vector<8x256xf32>
    %58 = tpu.matmul %56, %57, %cst_27 {dimension_numbers = #tpu.dot_dimension_numbers<[1], [0], [0], [1], [0, 0, 1, 1], [], []>} : vector<8x72xf32>, vector<72x256xf32>, vector<8x256xf32> -> vector<8x256xf32>
    %59 = vector.extract_strided_slice %58 {offsets = [0, 0], sizes = [4, 256], strides = [1, 1]} : vector<8x256xf32> to vector<4x256xf32>
    %c1_i32_28 = arith.constant 1 : i32
    %60 = arith.muli %arg0, %c1_i32_28 : i32
    %c0_i32 = arith.constant 0 : i32
    %61 = arith.addi %60, %c0_i32 : i32
    %62 = arith.index_cast %61 : i32 to index
    %c0_29 = arith.constant 0 : index
    %c0_30 = arith.constant 0 : index
    %63 = vector.load %arg6[%62, %c0_29, %c0_30] : memref<2x4x256xf32, #tpu.memory_space<vmem>>, vector<1x4x256xf32>
    %64 = vector.shape_cast %63 : vector<1x4x256xf32> to vector<4x256xf32>
    %65 = vector.shape_cast %59 : vector<4x256xf32> to vector<1x4x256xf32>
    tpu.vector_store %arg6[%62, %c0_29, %c0_30], %65 {strides = array<i32>} : memref<2x4x256xf32, #tpu.memory_space<vmem>>, vector<1x4x256xf32>,
    %66 = vector.extract_strided_slice %58 {offsets = [0, 0], sizes = [4, 256], strides = [1, 1]} : vector<8x256xf32> to vector<4x256xf32>
    %cst_31 = arith.constant dense<0.000000e+00> : vector<4xf32>
    %67 = vector.multi_reduction <add>, %66, %cst_31 [1] : vector<4x256xf32> to vector<4xf32>
    %68 = vector.shape_cast %67 : vector<4xf32> to vector<4x1xf32>
    %c0_i32_32 = arith.constant 0 : i32
    %69 = arith.cmpi eq, %arg0, %c0_i32_32 : i32
    %70 = arith.extui %69 : i1 to i32
    %c0_i32_33 = arith.constant 0 : i32
    %71 = arith.cmpi ne, %70, %c0_i32_33 : i32
    scf.if %71 {
      %c0_38 = arith.constant 0 : index
      %c0_39 = arith.constant 0 : index
      %78 = vector.load %arg8[%c0_38, %c0_39] : memref<4x1xf32, #tpu.memory_space<vmem>>, vector<4x1xf32>
      tpu.vector_store %arg8[%c0_38, %c0_39], %68 {strides = array<i32>} : memref<4x1xf32, #tpu.memory_space<vmem>>, vector<4x1xf32>,
    } else {
    }
    %c0_i32_34 = arith.constant 0 : i32
    %72 = arith.cmpi sgt, %arg0, %c0_i32_34 : i32
    %73 = arith.extui %72 : i1 to i32
    %c0_i32_35 = arith.constant 0 : i32
    %74 = arith.cmpi ne, %73, %c0_i32_35 : i32
    scf.if %74 {
      %c0_38 = arith.constant 0 : index
      %c0_39 = arith.constant 0 : index
      %78 = vector.load %arg8[%c0_38, %c0_39] : memref<4x1xf32, #tpu.memory_space<vmem>>, vector<4x1xf32>
      %79 = arith.addf %78, %68 : vector<4x1xf32>
      %c0_40 = arith.constant 0 : index
      %c0_41 = arith.constant 0 : index
      %80 = vector.load %arg8[%c0_40, %c0_41] : memref<4x1xf32, #tpu.memory_space<vmem>>, vector<4x1xf32>
      tpu.vector_store %arg8[%c0_40, %c0_41], %79 {strides = array<i32>} : memref<4x1xf32, #tpu.memory_space<vmem>>, vector<4x1xf32>,
    } else {
    }
    %c1_i32_36 = arith.constant 1 : i32
    %75 = arith.cmpi eq, %arg0, %c1_i32_36 : i32
    %76 = arith.extui %75 : i1 to i32
    %c0_i32_37 = arith.constant 0 : i32
    %77 = arith.cmpi ne, %76, %c0_i32_37 : i32
    scf.if %77 {
      %c0_38 = arith.constant 0 : index
      %c0_39 = arith.constant 0 : index
      %78 = vector.load %arg8[%c0_38, %c0_39] : memref<4x1xf32, #tpu.memory_space<vmem>>, vector<4x1xf32>
      %cst_40 = arith.constant 0.001953125 : f32
      %79 = vector.broadcast %cst_40 : f32 to vector<4x1xf32>
      %80 = arith.mulf %78, %79 : vector<4x1xf32>
      %cst_41 = arith.constant 0.000000e+00 : f32
      %81 = vector.broadcast %cst_41 : f32 to vector<4x1xf32>
      %c0_42 = arith.constant 0 : index
      %c0_43 = arith.constant 0 : index
      %c0_44 = arith.constant 0 : index
      %82 = vector.load %arg6[%c0_42, %c0_43, %c0_44] : memref<2x4x256xf32, #tpu.memory_space<vmem>>, vector<1x4x256xf32>
      %83 = vector.shape_cast %80 : vector<4x1xf32> to vector<1x4x1xf32>
      %84 = vector.broadcast %83 : vector<1x4x1xf32> to vector<1x4x256xf32>
      %85 = arith.subf %82, %84 : vector<1x4x256xf32>
      %86 = arith.mulf %85, %85 : vector<1x4x256xf32>
      %cst_45 = arith.constant dense<0.000000e+00> : vector<4x256xf32>
      %87 = vector.multi_reduction <add>, %86, %cst_45 [0] : vector<1x4x256xf32> to vector<4x256xf32>
      %cst_46 = arith.constant dense<0.000000e+00> : vector<4xf32>
      %88 = vector.multi_reduction <add>, %87, %cst_46 [1] : vector<4x256xf32> to vector<4xf32>
      %89 = vector.shape_cast %88 : vector<4xf32> to vector<4x1xf32>
      %90 = arith.addf %81, %89 : vector<4x1xf32>
      %c1_47 = arith.constant 1 : index
      %c0_48 = arith.constant 0 : index
      %c0_49 = arith.constant 0 : index
      %91 = vector.load %arg6[%c1_47, %c0_48, %c0_49] : memref<2x4x256xf32, #tpu.memory_space<vmem>>, vector<1x4x256xf32>
      %92 = vector.shape_cast %80 : vector<4x1xf32> to vector<1x4x1xf32>
      %93 = vector.broadcast %92 : vector<1x4x1xf32> to vector<1x4x256xf32>
      %94 = arith.subf %91, %93 : vector<1x4x256xf32>
      %95 = arith.mulf %94, %94 : vector<1x4x256xf32>
      %cst_50 = arith.constant dense<0.000000e+00> : vector<4x256xf32>
      %96 = vector.multi_reduction <add>, %95, %cst_50 [0] : vector<1x4x256xf32> to vector<4x256xf32>
      %cst_51 = arith.constant dense<0.000000e+00> : vector<4xf32>
      %97 = vector.multi_reduction <add>, %96, %cst_51 [1] : vector<4x256xf32> to vector<4xf32>
      %98 = vector.shape_cast %97 : vector<4xf32> to vector<4x1xf32>
      %99 = arith.addf %90, %98 : vector<4x1xf32>
      %cst_52 = arith.constant 0.001953125 : f32
      %100 = vector.broadcast %cst_52 : f32 to vector<4x1xf32>
      %101 = arith.mulf %99, %100 : vector<4x1xf32>
      %c0_53 = arith.constant 0 : index
      %c0_54 = arith.constant 0 : index
      %102 = vector.load %arg4[%c0_53, %c0_54] : memref<4x1xf32, #tpu.memory_space<vmem>>, vector<4x1xf32>
      %cst_55 = arith.constant 9.99999974E-6 : f32
      %103 = vector.broadcast %cst_55 : f32 to vector<4x1xf32>
      %104 = arith.addf %101, %103 : vector<4x1xf32>
      %105 = math.rsqrt %104 : vector<4x1xf32>
      %106 = arith.mulf %102, %105 : vector<4x1xf32>
      %c0_56 = arith.constant 0 : index
      %c0_57 = arith.constant 0 : index
      %107 = vector.load %arg5[%c0_56, %c0_57] : memref<4x1xf32, #tpu.memory_space<vmem>>, vector<4x1xf32>
      %108 = arith.mulf %80, %106 : vector<4x1xf32>
      %109 = arith.subf %107, %108 : vector<4x1xf32>
      %c0_58 = arith.constant 0 : index
      %c0_59 = arith.constant 0 : index
      %c0_60 = arith.constant 0 : index
      %110 = vector.load %arg6[%c0_58, %c0_59, %c0_60] : memref<2x4x256xf32, #tpu.memory_space<vmem>>, vector<1x4x256xf32>
      %111 = vector.shape_cast %106 : vector<4x1xf32> to vector<1x4x1xf32>
      %112 = vector.broadcast %111 : vector<1x4x1xf32> to vector<1x4x256xf32>
      %113 = arith.mulf %110, %112 : vector<1x4x256xf32>
      %114 = vector.shape_cast %109 : vector<4x1xf32> to vector<1x4x1xf32>
      %115 = vector.broadcast %114 : vector<1x4x1xf32> to vector<1x4x256xf32>
      %116 = arith.addf %113, %115 : vector<1x4x256xf32>
      %cst_61 = arith.constant 0.000000e+00 : f32
      %117 = vector.broadcast %cst_61 : f32 to vector<1x4x256xf32>
      %118 = arith.cmpf oge, %116, %117 : vector<1x4x256xf32>
      %cst_62 = arith.constant 1.000000e-01 : f32
      %119 = vector.broadcast %cst_62 : f32 to vector<1x4x256xf32>
      %120 = arith.mulf %119, %116 : vector<1x4x256xf32>
      %121 = arith.select %118, %116, %120 : vector<1x4x256xi1>, vector<1x4x256xf32>
      %c0_63 = arith.constant 0 : index
      %c0_64 = arith.constant 0 : index
      %c0_65 = arith.constant 0 : index
      %122 = vector.load %arg6[%c0_63, %c0_64, %c0_65] : memref<2x4x256xf32, #tpu.memory_space<vmem>>, vector<1x4x256xf32>
      tpu.vector_store %arg6[%c0_63, %c0_64, %c0_65], %121 {strides = array<i32>} : memref<2x4x256xf32, #tpu.memory_space<vmem>>, vector<1x4x256xf32>,
      %c1_66 = arith.constant 1 : index
      %c0_67 = arith.constant 0 : index
      %c0_68 = arith.constant 0 : index
      %123 = vector.load %arg6[%c1_66, %c0_67, %c0_68] : memref<2x4x256xf32, #tpu.memory_space<vmem>>, vector<1x4x256xf32>
      %124 = vector.shape_cast %106 : vector<4x1xf32> to vector<1x4x1xf32>
      %125 = vector.broadcast %124 : vector<1x4x1xf32> to vector<1x4x256xf32>
      %126 = arith.mulf %123, %125 : vector<1x4x256xf32>
      %127 = vector.shape_cast %109 : vector<4x1xf32> to vector<1x4x1xf32>
      %128 = vector.broadcast %127 : vector<1x4x1xf32> to vector<1x4x256xf32>
      %129 = arith.addf %126, %128 : vector<1x4x256xf32>
      %cst_69 = arith.constant 0.000000e+00 : f32
      %130 = vector.broadcast %cst_69 : f32 to vector<1x4x256xf32>
      %131 = arith.cmpf oge, %129, %130 : vector<1x4x256xf32>
      %cst_70 = arith.constant 1.000000e-01 : f32
      %132 = vector.broadcast %cst_70 : f32 to vector<1x4x256xf32>
      %133 = arith.mulf %132, %129 : vector<1x4x256xf32>
      %134 = arith.select %131, %129, %133 : vector<1x4x256xi1>, vector<1x4x256xf32>
      %c1_71 = arith.constant 1 : index
      %c0_72 = arith.constant 0 : index
      %c0_73 = arith.constant 0 : index
      %135 = vector.load %arg6[%c1_71, %c0_72, %c0_73] : memref<2x4x256xf32, #tpu.memory_space<vmem>>, vector<1x4x256xf32>
      tpu.vector_store %arg6[%c1_71, %c0_72, %c0_73], %134 {strides = array<i32>} : memref<2x4x256xf32, #tpu.memory_space<vmem>>, vector<1x4x256xf32>,
    } else {
    }
    return
  }
  func.func @transform_0(%arg0: i32) -> (i32, i32, i32) {
    %c0_i32 = arith.constant 0 : i32
    %c0_i32_0 = arith.constant 0 : i32
    %c0_i32_1 = arith.constant 0 : i32
    return %arg0, %c0_i32, %c0_i32_0 : i32, i32, i32
  }
  func.func @transform_1(%arg0: i32) -> (i32, i32) {
    %c0_i32 = arith.constant 0 : i32
    %c0_i32_0 = arith.constant 0 : i32
    %c0_i32_1 = arith.constant 0 : i32
    return %c0_i32, %c0_i32_0 : i32, i32
  }
  func.func @transform_2(%arg0: i32) -> (i32, i32) {
    %c0_i32 = arith.constant 0 : i32
    %c0_i32_0 = arith.constant 0 : i32
    %c0_i32_1 = arith.constant 0 : i32
    return %c0_i32, %c0_i32_0 : i32, i32
  }
  func.func @transform_3(%arg0: i32) -> (i32, i32) {
    %c0_i32 = arith.constant 0 : i32
    %c0_i32_0 = arith.constant 0 : i32
    %c0_i32_1 = arith.constant 0 : i32
    return %c0_i32, %c0_i32_0 : i32, i32
  }
  func.func @transform_4(%arg0: i32) -> (i32, i32) {
    %c0_i32 = arith.constant 0 : i32
    %c0_i32_0 = arith.constant 0 : i32
    %c0_i32_1 = arith.constant 0 : i32
    return %c0_i32, %c0_i32_0 : i32, i32
  }
  func.func @transform_5(%arg0: i32) -> (i32, i32, i32) {
    %c0_i32 = arith.constant 0 : i32
    %c0_i32_0 = arith.constant 0 : i32
    %c0_i32_1 = arith.constant 0 : i32
    %c0_i32_2 = arith.constant 0 : i32
    return %c0_i32, %c0_i32_0, %c0_i32_1 : i32, i32, i32
  }
}

</mosaic_0001>

<llo_original>
// kernel: basic_block_forward.1
$region0: #{basic_block_forward.1}
  #allocation0 [shape = 'u32[]', space=smem, size = 0x4, offset = 0x4, fixed_abs, tag = 'smem constant byte address 0x4 - core index']
  #allocation1 [shape = 'u32[144,128]{1,0:T(1,128)}', space=vmem, size = 0x12000, scoped, tag = 'internal scratch']
  #allocation2 [shape = 'f32[72,256]{1,0:T(8,128)}', space=vmem, size = 0x12000, scoped, tag = 'scratch operand']
  #allocation3 [shape = 'f32[4,1]{1,0:T(4,128)}', space=vmem, size = 0x800, scoped, tag = 'scratch operand']
  %s0 = inlined_call_operand.vmem [shape: f32[2,4,256], index: 0, kind: input, shape index: {}]
  %s1 = inlined_call_operand.vmem [shape: f32[8,72], index: 1, kind: input, shape index: {}]
  %s2 = inlined_call_operand.vmem [shape: f32[9,256], index: 2, kind: input, shape index: {}]
  %s3 = inlined_call_operand.vmem [shape: f32[4,1], index: 3, kind: input, shape index: {}]
  %s4 = inlined_call_operand.vmem [shape: f32[4,1], index: 4, kind: input, shape index: {}]
  %s5 = inlined_call_operand.vmem [shape: f32[2,4,256], index: 5, kind: output, shape index: {}]
  %s6 = sld [smem:[#allocation0]]
  $region65: #{basic_block_forward.1} parent=0
    _
  %s8 = ssub.s32 1, %s6
  %s9 = scalar_select 0, %s8, %s6
  loop: start=0, step=1, limit=4
  $region2: #{basic_block_forward.1} parent=0 // loop_pre_header
    _
  $region3: #{basic_block_forward.1} parent=0 // loop_header
    %s11 = sphi 0, %s15
    %p12 = scmp.ge.s32.totalorder %s11, 4
    %s21 = sphi 0, %s23
    %s24 = sphi 0, %s21
    %s25 = sphi 0, %s24
    %s41 = sphi 0, %s25
    %s45 = sphi 0, %s45
    %s47 = sphi 0, %s45
    %s48 = sphi 0, %s47
    %s62 = sphi 0, %s48
    %s66 = sphi 0, %s66
    %s68 = sphi 0, %s66
    %s69 = sphi 0, %s68
    %s83 = sphi 0, %s69
    %s87 = sphi 0, %s87
    %s89 = sphi 0, %s87
    %s90 = sphi 0, %s89
    %s104 = sphi 0, %s90
    %s108 = sphi 0, %s108
    %s110 = sphi 0, %s108
    %s111 = sphi 0, %s110
    %s125 = sphi 0, %s111
    %s129 = sphi 0, %s129
    %s131 = sphi 0, %s129
    %s132 = sphi 0, %s131
    %s146 = sphi 0, %s132
  $region4: #{basic_block_forward.1} parent=0 // loop_header_branch
    %14 = sbr.rel (%p12) target = $region8
  $region5: #{basic_block_forward.1} parent=0 // loop_body
    %s16 = ssub.s32 %s11, 1
    %s17 = ssub.s32 %s11, 2
    %s18 = sadd.s32 %s11, 1
    %s19 = ssub.s32 %s11, %s18
    %p20 = scmp.eq.s32.totalorder %s19, 0
    %s22 = sadd.s32 %s21, 1
    %s23 = scalar_select %p20, %s21, %s22
    %p26 = pneg %p20
    %p27 = scmp.eq.s32.totalorder %s11, 1
    %p28 = por %p26, %p27
    %p29 = scmp.ne.s32.totalorder %s21, %s24
    %p30 = scmp.eq.s32.totalorder %s11, 0
    %p31 = por %p29, %p30
    %p32 = scmp.ne.s32.totalorder %s21, %s24
    %p33 = scmp.eq.s32.totalorder %s16, 1
    %p34 = por %p32, %p33
    %p35 = scmp.ne.s32.totalorder %s24, %s25
    %p36 = scmp.eq.s32.totalorder %s16, 0
    %p37 = por %p35, %p36
    %p38 = scmp.ne.s32.totalorder %s24, %s25
    %p39 = scmp.eq.s32.totalorder %s17, 1
    %p40 = por %p38, %p39
    %p42 = scmp.ne.s32.totalorder %s25, %s41
    %p43 = scmp.eq.s32.totalorder %s17, 0
    %p44 = por %p42, %p43
    %s46 = sadd.s32 %s45, 1
    %p49 = scmp.eq.s32.totalorder %s11, 1
    %p50 = scmp.ne.s32.totalorder %s45, %s47
    %p51 = scmp.eq.s32.totalorder %s11, 0
    %p52 = por %p50, %p51
    %p53 = scmp.ne.s32.totalorder %s45, %s47
    %p54 = scmp.eq.s32.totalorder %s16, 1
    %p55 = por %p53, %p54
    %p56 = scmp.ne.s32.totalorder %s47, %s48
    %p57 = scmp.eq.s32.totalorder %s16, 0
    %p58 = por %p56, %p57
    %p59 = scmp.ne.s32.totalorder %s47, %s48
    %p60 = scmp.eq.s32.totalorder %s17, 1
    %p61 = por %p59, %p60
    %p63 = scmp.ne.s32.totalorder %s48, %s62
    %p64 = scmp.eq.s32.totalorder %s17, 0
    %p65 = por %p63, %p64
    %s67 = sadd.s32 %s66, 1
    %p70 = scmp.eq.s32.totalorder %s11, 1
    %p71 = scmp.ne.s32.totalorder %s66, %s68
    %p72 = scmp.eq.s32.totalorder %s11, 0
    %p73 = por %p71, %p72
    %p74 = scmp.ne.s32.totalorder %s66, %s68
    %p75 = scmp.eq.s32.totalorder %s16, 1
    %p76 = por %p74, %p75
    %p77 = scmp.ne.s32.totalorder %s68, %s69
    %p78 = scmp.eq.s32.totalorder %s16, 0
    %p79 = por %p77, %p78
    %p80 = scmp.ne.s32.totalorder %s68, %s69
    %p81 = scmp.eq.s32.totalorder %s17, 1
    %p82 = por %p80, %p81
    %p84 = scmp.ne.s32.totalorder %s69, %s83
    %p85 = scmp.eq.s32.totalorder %s17, 0
    %p86 = por %p84, %p85
    %s88 = sadd.s32 %s87, 1
    %p91 = scmp.eq.s32.totalorder %s11, 1
    %p92 = scmp.ne.s32.totalorder %s87, %s89
    %p93 = scmp.eq.s32.totalorder %s11, 0
    %p94 = por %p92, %p93
    %p95 = scmp.ne.s32.totalorder %s87, %s89
    %p96 = scmp.eq.s32.totalorder %s16, 1
    %p97 = por %p95, %p96
    %p98 = scmp.ne.s32.totalorder %s89, %s90
    %p99 = scmp.eq.s32.totalorder %s16, 0
    %p100 = por %p98, %p99
    %p101 = scmp.ne.s32.totalorder %s89, %s90
    %p102 = scmp.eq.s32.totalorder %s17, 1
    %p103 = por %p101, %p102
    %p105 = scmp.ne.s32.totalorder %s90, %s104
    %p106 = scmp.eq.s32.totalorder %s17, 0
    %p107 = por %p105, %p106
    %s109 = sadd.s32 %s108, 1
    %p112 = scmp.eq.s32.totalorder %s11, 1
    %p113 = scmp.ne.s32.totalorder %s108, %s110
    %p114 = scmp.eq.s32.totalorder %s11, 0
    %p115 = por %p113, %p114
    %p116 = scmp.ne.s32.totalorder %s108, %s110
    %p117 = scmp.eq.s32.totalorder %s16, 1
    %p118 = por %p116, %p117
    %p119 = scmp.ne.s32.totalorder %s110, %s111
    %p120 = scmp.eq.s32.totalorder %s16, 0
    %p121 = por %p119, %p120
    %p122 = scmp.ne.s32.totalorder %s110, %s111
    %p123 = scmp.eq.s32.totalorder %s17, 1
    %p124 = por %p122, %p123
    %p126 = scmp.ne.s32.totalorder %s111, %s125
    %p127 = scmp.eq.s32.totalorder %s17, 0
    %p128 = por %p126, %p127
    %s130 = sadd.s32 %s129, 1
    %p133 = scmp.eq.s32.totalorder %s11, 1
    %p134 = scmp.ne.s32.totalorder %s129, %s131
    %p135 = scmp.eq.s32.totalorder %s11, 0
    %p136 = por %p134, %p135
    %p137 = scmp.ne.s32.totalorder %s129, %s131
    %p138 = scmp.eq.s32.totalorder %s16, 1
    %p139 = por %p137, %p138
    %p140 = scmp.ne.s32.totalorder %s131, %s132
    %p141 = scmp.eq.s32.totalorder %s16, 0
    %p142 = por %p140, %p141
    %p143 = scmp.ne.s32.totalorder %s131, %s132
    %p144 = scmp.eq.s32.totalorder %s17, 1
    %p145 = por %p143, %p144
    %p147 = scmp.ne.s32.totalorder %s132, %s146
    %p148 = scmp.eq.s32.totalorder %s17, 0
    %p149 = por %p147, %p148
    %p150 = scmp.le.s32.totalorder 1, %s11
    %p151 = scmp.lt.s32.totalorder %s11, 3
    %p152 = pnand %p150, %p151
    %p153 = pneg %p152
    // Predicated region
    $region9: #{basic_block_forward.1} parent=5 // pred_check
      _
    $region10: #{basic_block_forward.1} parent=5 // pred_check_branch
      %155 = sbr.rel (%p152) target = $region12
    $region11: #{basic_block_forward.1} parent=5 // pred_region
      %s156 = ssub.s32 %s11, 1
      // Predicated region
      $region13: #{basic_block_forward.1} parent=11 // pred_check
        %p157 = pneg %p58
      $region14: #{basic_block_forward.1} parent=11 // pred_check_branch
        %159 = sbr.rel (%p157) target = $region16
      $region15: #{basic_block_forward.1} parent=11 // pred_region
        _
      $region16: #{basic_block_forward.1} parent=11 // pred_fallthru
        _
      // Predicated region
      $region17: #{basic_block_forward.1} parent=11 // pred_check
        %p160 = pneg %p79
      $region18: #{basic_block_forward.1} parent=11 // pred_check_branch
        %162 = sbr.rel (%p160) target = $region20
      $region19: #{basic_block_forward.1} parent=11 // pred_region
        _
      $region20: #{basic_block_forward.1} parent=11 // pred_fallthru
        _
      // Predicated region
      $region21: #{basic_block_forward.1} parent=11 // pred_check
        %p163 = pneg %p100
      $region22: #{basic_block_forward.1} parent=11 // pred_check_branch
        %165 = sbr.rel (%p163) target = $region24
      $region23: #{basic_block_forward.1} parent=11 // pred_region
        _
      $region24: #{basic_block_forward.1} parent=11 // pred_fallthru
        _
      // Predicated region
      $region25: #{basic_block_forward.1} parent=11 // pred_check
        %p166 = pneg %p121
      $region26: #{basic_block_forward.1} parent=11 // pred_check_branch
        %168 = sbr.rel (%p166) target = $region28
      $region27: #{basic_block_forward.1} parent=11 // pred_region
        _
      $region28: #{basic_block_forward.1} parent=11 // pred_fallthru
        _
    $region12: #{basic_block_forward.1} parent=5 // pred_fallthru
      _
    %p169 = scmp.lt.s32.totalorder %s11, 2
    // Predicated region
    $region29: #{basic_block_forward.1} parent=5 // pred_check
      %p170 = pneg %p169
    $region30: #{basic_block_forward.1} parent=5 // pred_check_branch
      %172 = sbr.rel (%p170) target = $region32
    $region31: #{basic_block_forward.1} parent=5 // pred_region
      // Predicated region
      $region33: #{basic_block_forward.1} parent=31 // pred_check
        %p173 = pneg %p31
      $region34: #{basic_block_forward.1} parent=31 // pred_check_branch
        %175 = sbr.rel (%p173) target = $region36
      $region35: #{basic_block_forward.1} parent=31 // pred_region
        %p176 = scmp.lt.s32.totalorder %s11, 1
        %s177 = scalar_select %p176, %s11, 1
        %s178 = smul.addr %s177, 2
        %s179 = smul.addr %s178, 4
        %s180 = scalar_lea.vmem %s0, %s179
      $region36: #{basic_block_forward.1} parent=31 // pred_fallthru
        _
    $region32: #{basic_block_forward.1} parent=5 // pred_fallthru
      _
    %p181 = scmp.le.s32.totalorder 1, %s11
    %p182 = scmp.lt.s32.totalorder %s11, 3
    %p183 = pnand %p181, %p182
    %p184 = pneg %p183
    // Predicated region
    $region37: #{basic_block_forward.1} parent=5 // pred_check
      _
    $region38: #{basic_block_forward.1} parent=5 // pred_check_branch
      %186 = sbr.rel (%p183) target = $region40
    $region39: #{basic_block_forward.1} parent=5 // pred_region
      %s187 = ssub.s32 %s11, 1
      %p188 = scmp.lt.s32.totalorder %s16, 1
      %s189 = scalar_select %p188, %s16, 1
      %s190 = smul.addr %s189, 2
      %s191 = smul.addr %s190, 4
      %s192 = scalar_lea.vmem %s0, %s191
      %p193 = pneg %p37
      %p194 = pneg %p34
      %p195 = pneg %p58
      %p196 = pneg %p55
      %p197 = pneg %p79
      %p198 = pneg %p76
      %p199 = pneg %p100
      %p200 = pneg %p97
      %p201 = pneg %p121
      %p202 = pneg %p118
      %p203 = pneg %p142
      %p204 = pneg %p139
      %p205 = scmp.lt.s32.totalorder %s16, 1
      %s206 = scalar_select %p205, %s16, 1
      %s207 = smul.addr %s206, 2
      %s208 = smul.addr %s207, 4
      %s209 = scalar_lea.vmem %s0, %s208
      %v210 = vld [vmem:[%s209] sm:$0xff]
      %v212 = vcombine.high %v210, %v210
      %214 = vrot.lane.b32.xlu0 %v210, 17
      %v215 = vpop.permute.xlu0 %214
      %216 = vrot.lane.b32.xlu0 %v212, 17
      %v217 = vpop.permute.xlu0 %216
      %v218 = vlaneseq
      %v219 = vand.u32 %v218, 127
      %vm220 = vcmp.lt.s32.totalorder %v219, 17
      %v221 = vsel %vm220, %v215, %v217
      %v222 = vsel %vm220, %v217, %v215
      %v223 = vld [vmem:[%s2] ss:$8 sm:$0x3]
      %v225 = vlaneseq
      %v226 = vshrl.u32 %v225, 7
      %v227 = vsub.s32 0, %v226
      %v228 = vrot.slane %v223, %v227
      %v229 = vlaneseq
      %v230 = vshrl.u32 %v229, 7
      %v231 = vsub.s32 1, %v230
      %v232 = vrot.slane %v223, %v231
      %v235 = vmul.f32 %v222, %v228
      %v236 = vmul.f32 %v221, %v232
      %vm237 = vcmask 1043456
      %v238 = vsel %vm237, %v235, 0.0
      %v239 = vsel %vm237, %v236, 0.0
      %240 = vst [vmem:[#allocation2] sm:$0xff] %v238
      %241 = vst [vmem:[#allocation2 + $0x8] sm:$0xff] %v239
      %242 = vrot.lane.b32.xlu0 %v210, 16
      %v243 = vpop.permute.xlu0 %242
      %244 = vrot.lane.b32.xlu0 %v212, 16
      %v245 = vpop.permute.xlu0 %244
      %vm246 = vcmp.lt.s32.totalorder %v219, 16
      %v247 = vsel %vm246, %v243, %v245
      %v248 = vsel %vm246, %v245, %v243
      %s249 = scalar_lea.vmem %s2, 1
      %v250 = vld [vmem:[%s249] ss:$8 sm:$0x3]
      %v252 = vlaneseq
      %v253 = vshrl.u32 %v252, 7
      %v254 = vsub.s32 0, %v253
      %v255 = vrot.slane %v250, %v254
      %v256 = vlaneseq
      %v257 = vshrl.u32 %v256, 7
      %v258 = vsub.s32 1, %v257
      %v259 = vrot.slane %v250, %v258
      %v262 = vmul.f32 %v248, %v255
      %v263 = vmul.f32 %v247, %v259
      %v264 = vsel %vm237, %v262, 0.0
      %v265 = vsel %vm237, %v263, 0.0
      %266 = vst [vmem:[#allocation2 + $0x10] sm:$0xff] %v264
      %267 = vst [vmem:[#allocation2 + $0x18] sm:$0xff] %v265
      %268 = vrot.lane.b32.xlu0 %v210, 15
      %v269 = vpop.permute.xlu0 %268
      %270 = vrot.lane.b32.xlu0 %v212, 15
      %v271 = vpop.permute.xlu0 %270
      %vm272 = vcmp.lt.s32.totalorder %v219, 15
      %v273 = vsel %vm272, %v269, %v271
      %v274 = vsel %vm272, %v271, %v269
      %s275 = scalar_lea.vmem %s2, 2
      %v276 = vld [vmem:[%s275] ss:$8 sm:$0x3]
      %v278 = vlaneseq
      %v279 = vshrl.u32 %v278, 7
      %v280 = vsub.s32 0, %v279
      %v281 = vrot.slane %v276, %v280
      %v282 = vlaneseq
      %v283 = vshrl.u32 %v282, 7
      %v284 = vsub.s32 1, %v283
      %v285 = vrot.slane %v276, %v284
      %v288 = vmul.f32 %v274, %v281
      %v289 = vmul.f32 %v273, %v285
      %v290 = vsel %vm237, %v288, 0.0
      %v291 = vsel %vm237, %v289, 0.0
      %292 = vst [vmem:[#allocation2 + $0x20] sm:$0xff] %v290
      %293 = vst [vmem:[#allocation2 + $0x28] sm:$0xff] %v291
      %294 = vrot.lane.b32.xlu0 %v210, 1
      %v295 = vpop.permute.xlu0 %294
      %296 = vrot.lane.b32.xlu0 %v212, 1
      %v297 = vpop.permute.xlu0 %296
      %vm298 = vcmp.lt.s32.totalorder %v219, 1
      %v299 = vsel %vm298, %v295, %v297
      %v300 = vsel %vm298, %v297, %v295
      %s301 = scalar_lea.vmem %s2, 3
      %v302 = vld [vmem:[%s301] ss:$8 sm:$0x3]
      %v304 = vlaneseq
      %v305 = vshrl.u32 %v304, 7
      %v306 = vsub.s32 0, %v305
      %v307 = vrot.slane %v302, %v306
      %v308 = vlaneseq
      %v309 = vshrl.u32 %v308, 7
      %v310 = vsub.s32 1, %v309
      %v311 = vrot.slane %v302, %v310
      %v314 = vmul.f32 %v300, %v307
      %v315 = vmul.f32 %v299, %v311
      %v316 = vsel %vm237, %v314, 0.0
      %v317 = vsel %vm237, %v315, 0.0
      %318 = vst [vmem:[#allocation2 + $0x30] sm:$0xff] %v316
      %319 = vst [vmem:[#allocation2 + $0x38] sm:$0xff] %v317
      %s320 = scalar_lea.vmem %s2, 4
      %v321 = vld [vmem:[%s320] ss:$8 sm:$0x3]
      %v323 = vlaneseq
      %v324 = vshrl.u32 %v323, 7
      %v325 = vsub.s32 0, %v324
      %v326 = vrot.slane %v321, %v325
      %v327 = vlaneseq
      %v328 = vshrl.u32 %v327, 7
      %v329 = vsub.s32 1, %v328
      %v330 = vrot.slane %v321, %v329
      %v331 = vcombine.low %v326, %v330
      %v333 = vmul.f32 %v210, %v331
      %v335 = vcombine.high %v333, %v333
      %v337 = vsel %vm237, %v333, 0.0
      %v338 = vsel %vm237, %v335, 0.0
      %339 = vst [vmem:[#allocation2 + $0x40] sm:$0xff] %v337
      %340 = vst [vmem:[#allocation2 + $0x48] sm:$0xff] %v338
      %341 = vrot.lane.b32.xlu0 %v210, 127
      %v342 = vpop.permute.xlu0 %341
      %343 = vrot.lane.b32.xlu0 %v212, 127
      %v344 = vpop.permute.xlu0 %343
      %vm345 = vcmp.lt.s32.totalorder %v219, 127
      %v346 = vsel %vm345, %v342, %v344
      %v347 = vsel %vm345, %v344, %v342
      %s348 = scalar_lea.vmem %s2, 5
      %v349 = vld [vmem:[%s348] ss:$8 sm:$0x3]
      %v351 = vlaneseq
      %v352 = vshrl.u32 %v351, 7
      %v353 = vsub.s32 0, %v352
      %v354 = vrot.slane %v349, %v353
      %v355 = vlaneseq
      %v356 = vshrl.u32 %v355, 7
      %v357 = vsub.s32 1, %v356
      %v358 = vrot.slane %v349, %v357
      %v361 = vmul.f32 %v346, %v354
      %v362 = vmul.f32 %v347, %v358
      %v363 = vsel %vm237, %v361, 0.0
      %v364 = vsel %vm237, %v362, 0.0
      %365 = vst [vmem:[#allocation2 + $0x50] sm:$0xff] %v363
      %366 = vst [vmem:[#allocation2 + $0x58] sm:$0xff] %v364
      %367 = vrot.lane.b32.xlu0 %v210, 113
      %v368 = vpop.permute.xlu0 %367
      %369 = vrot.lane.b32.xlu0 %v212, 113
      %v370 = vpop.permute.xlu0 %369
      %vm371 = vcmp.lt.s32.totalorder %v219, 113
      %v372 = vsel %vm371, %v368, %v370
      %v373 = vsel %vm371, %v370, %v368
      %s374 = scalar_lea.vmem %s2, 6
      %v375 = vld [vmem:[%s374] ss:$8 sm:$0x3]
      %v377 = vlaneseq
      %v378 = vshrl.u32 %v377, 7
      %v379 = vsub.s32 0, %v378
      %v380 = vrot.slane %v375, %v379
      %v381 = vlaneseq
      %v382 = vshrl.u32 %v381, 7
      %v383 = vsub.s32 1, %v382
      %v384 = vrot.slane %v375, %v383
      %v387 = vmul.f32 %v372, %v380
      %v388 = vmul.f32 %v373, %v384
      %v389 = vsel %vm237, %v387, 0.0
      %v390 = vsel %vm237, %v388, 0.0
      %391 = vst [vmem:[#allocation2 + $0x60] sm:$0xff] %v389
      %392 = vst [vmem:[#allocation2 + $0x68] sm:$0xff] %v390
      %393 = vrot.lane.b32.xlu0 %v210, 112
      %v394 = vpop.permute.xlu0 %393
      %395 = vrot.lane.b32.xlu0 %v212, 112
      %v396 = vpop.permute.xlu0 %395
      %vm397 = vcmp.lt.s32.totalorder %v219, 112
      %v398 = vsel %vm397, %v394, %v396
      %v399 = vsel %vm397, %v396, %v394
      %s400 = scalar_lea.vmem %s2, 7
      %v401 = vld [vmem:[%s400] ss:$8 sm:$0x3]
      %v403 = vlaneseq
      %v404 = vshrl.u32 %v403, 7
      %v405 = vsub.s32 0, %v404
      %v406 = vrot.slane %v401, %v405
      %v407 = vlaneseq
      %v408 = vshrl.u32 %v407, 7
      %v409 = vsub.s32 1, %v408
      %v410 = vrot.slane %v401, %v409
      %v413 = vmul.f32 %v398, %v406
      %v414 = vmul.f32 %v399, %v410
      %v415 = vsel %vm237, %v413, 0.0
      %v416 = vsel %vm237, %v414, 0.0
      %417 = vst [vmem:[#allocation2 + $0x70] sm:$0xff] %v415
      %418 = vst [vmem:[#allocation2 + $0x78] sm:$0xff] %v416
      %419 = vrot.lane.b32.xlu0 %v210, 111
      %v420 = vpop.permute.xlu0 %419
      %421 = vrot.lane.b32.xlu0 %v212, 111
      %v422 = vpop.permute.xlu0 %421
      %vm423 = vcmp.lt.s32.totalorder %v219, 111
      %v424 = vsel %vm423, %v420, %v422
      %v425 = vsel %vm423, %v422, %v420
      %s426 = scalar_lea.vmem %s2, 16
      %v427 = vld [vmem:[%s426] ss:$8 sm:$0x3]
      %v429 = vlaneseq
      %v430 = vshrl.u32 %v429, 7
      %v431 = vsub.s32 0, %v430
      %v432 = vrot.slane %v427, %v431
      %v433 = vlaneseq
      %v434 = vshrl.u32 %v433, 7
      %v435 = vsub.s32 1, %v434
      %v436 = vrot.slane %v427, %v435
      %v439 = vmul.f32 %v424, %v432
      %v440 = vmul.f32 %v425, %v436
      %v441 = vsel %vm237, %v439, 0.0
      %v442 = vsel %vm237, %v440, 0.0
      %443 = vst [vmem:[#allocation2 + $0x80] sm:$0xff] %v441
      %444 = vst [vmem:[#allocation2 + $0x88] sm:$0xff] %v442
      %v445 = vld [vmem:[%s1] sm:$0xff]
      %v446 = vld [vmem:[#allocation2] sm:$0xff]
      %v447 = vld [vmem:[#allocation2 + $0x8] sm:$0xff]
      %v448 = vld [vmem:[#allocation2 + $0x10] sm:$0xff]
      %v449 = vld [vmem:[#allocation2 + $0x18] sm:$0xff]
      %v450 = vld [vmem:[#allocation2 + $0x20] sm:$0xff]
      %v451 = vld [vmem:[#allocation2 + $0x28] sm:$0xff]
      %v452 = vld [vmem:[#allocation2 + $0x30] sm:$0xff]
      %v453 = vld [vmem:[#allocation2 + $0x38] sm:$0xff]
      %v454 = vld [vmem:[#allocation2 + $0x40] sm:$0xff]
      %v455 = vld [vmem:[#allocation2 + $0x48] sm:$0xff]
      %v456 = vld [vmem:[#allocation2 + $0x50] sm:$0xff]
      %v457 = vld [vmem:[#allocation2 + $0x58] sm:$0xff]
      %v458 = vld [vmem:[#allocation2 + $0x60] sm:$0xff]
      %v459 = vld [vmem:[#allocation2 + $0x68] sm:$0xff]
      %v460 = vld [vmem:[#allocation2 + $0x70] sm:$0xff]
      %v461 = vld [vmem:[#allocation2 + $0x78] sm:$0xff]
      %v462 = vld [vmem:[#allocation2 + $0x80] sm:$0xff]
      %v463 = vld [vmem:[#allocation2 + $0x88] sm:$0xff]
      %vm464 = vcmask 588800
      %v466 = vsel %vm464, %v445, 0
      %468 = vmatprep.subr.mxu0 0.0
      %469 = vmatpush1.msra.mxu0 0.0
      %470 = vmatprep.subr.mxu0 0.0
      %471 = vmatpush1.msra.mxu0 0.0
      %472 = vmatprep.subr.mxu0 0.0
      %473 = vmatpush1.msra.mxu0 0.0
      %474 = vmatprep.subr.mxu0 0.0
      %475 = vmatpush1.msra.mxu0 0.0
      %476 = vmatprep.subr.mxu0 0.0
      %477 = vmatpush1.msra.mxu0 0.0
      %478 = vmatprep.subr.mxu0 0.0
      %479 = vmatpush1.msra.mxu0 0.0
      %480 = vmatprep.subr.mxu0 0.0
      %481 = vmatpush1.msra.mxu0 0.0
      %482 = vmatprep.subr.mxu0 %v463
      %483 = vmatpush1.msra.mxu0 %v462
      %484 = vmatprep.subr.mxu0 %v461
      %485 = vmatpush1.msra.mxu0 %v460
      %486 = vmatprep.subr.mxu0 %v459
      %487 = vmatpush1.msra.mxu0 %v458
      %488 = vmatprep.subr.mxu0 %v457
      %489 = vmatpush1.msra.mxu0 %v456
      %490 = vmatprep.subr.mxu0 %v455
      %491 = vmatpush1.msra.mxu0 %v454
      %492 = vmatprep.subr.mxu0 %v453
      %493 = vmatpush1.msra.mxu0 %v452
      %494 = vmatprep.subr.mxu0 %v451
      %495 = vmatpush1.msra.mxu0 %v450
      %496 = vmatprep.subr.mxu0 %v449
      %497 = vmatpush1.msra.mxu0 %v448
      %498 = vmatprep.subr.mxu0 %v447
      %499 = vmatpush1.msra.mxu0 %v446
      %500 = vmatprep.subr.mxu0 0.0
      %501 = vmatpush2.msra.mxu0 0.0
      %502 = vmatprep.subr.mxu0 0.0
      %503 = vmatpush2.msra.mxu0 0.0
      %504 = vmatprep.subr.mxu0 0.0
      %505 = vmatpush2.msra.mxu0 0.0
      %506 = vmatprep.subr.mxu0 0.0
      %507 = vmatpush2.msra.mxu0 0.0
      %508 = vmatprep.subr.mxu0 0.0
      %509 = vmatpush2.msra.mxu0 0.0
      %510 = vmatprep.subr.mxu0 0.0
      %511 = vmatpush2.msra.mxu0 0.0
      %512 = vmatprep.subr.mxu0 0.0
      %513 = vmatpush2.msra.mxu0 0.0
      %514 = vmatprep.subr.mxu0 0.0
      %515 = vmatpush2.msra.mxu0 0.0
      %516 = vmatprep.subr.mxu0 0.0
      %517 = vmatpush2.msra.mxu0 0.0
      %518 = vmatprep.subr.mxu0 0.0
      %519 = vmatpush2.msra.mxu0 0.0
      %520 = vmatprep.subr.mxu0 0.0
      %521 = vmatpush2.msra.mxu0 0.0
      %522 = vmatprep.subr.mxu0 0.0
      %523 = vmatpush2.msra.mxu0 0.0
      %524 = vmatprep.subr.mxu0 0.0
      %525 = vmatpush2.msra.mxu0 0.0
      %526 = vmatprep.subr.mxu0 0.0
      %527 = vmatpush2.msra.mxu0 0.0
      %528 = vmatprep.subr.mxu0 0.0
      %529 = vmatpush2.msra.mxu0 0.0
      %530 = vmatprep.subr.mxu0 0.0
      %531 = vmatpush2.msra.mxu0 0.0
      %532 = vmatprep.mubr.f32.mxu0 0.0
      %533 = vmatmul.mubr.f32.gmra.mxu0 %v466
      %v534 = vpop.f32.mrf.mxu0
      %v535 = vadd.f32 0.0, %v534
      %v536 = vpop.f32.mrf.mxu0
      %v537 = vadd.f32 0.0, %v536
      %538 = vdwg.mxu0
      %v541 = vcombine.low %v535, %v537
      %s543 = smul.u32 %s16, 2
      %s544 = smul.addr %s543, 4
      %s545 = scalar_lea.vmem %s5, %s544
      %546 = vst [vmem:[%s545] sm:$0xff] %v541
      %v547 = vsel %vm237, %v535, 0.0
      %v548 = vsel %vm237, %v537, 0.0
      %v549 = vadd.f32 %v547, %v548
      %550 = vadd.xlane.f32.xlu0 %v549
      %v551 = vpop.xlane.xlu0 %550
      %p552 = scmp.eq.s32.totalorder %s16, 0
      // Predicated region
      $region41: #{basic_block_forward.1} parent=39 // pred_check
        %p553 = pneg %p552
      $region42: #{basic_block_forward.1} parent=39 // pred_check_branch
        %555 = sbr.rel (%p553) target = $region44
      $region43: #{basic_block_forward.1} parent=39 // pred_region
        %vm556 = vcmask 3072
        %557 = vst.msk [vmem:[#allocation3] sm:$0xf] %vm556, %v551
      $region44: #{basic_block_forward.1} parent=39 // pred_fallthru
        _
      %p558 = scmp.gt.s32.totalorder %s16, 0
      // Predicated region
      $region45: #{basic_block_forward.1} parent=39 // pred_check
        %p559 = pneg %p558
      $region46: #{basic_block_forward.1} parent=39 // pred_check_branch
        %561 = sbr.rel (%p559) target = $region48
      $region47: #{basic_block_forward.1} parent=39 // pred_region
        %v562 = vld [vmem:[#allocation3] sm:$0xf]
        %v563 = vadd.f32 %v562, %v551
        %vm564 = vcmask 3072
        %565 = vst.msk [vmem:[#allocation3] sm:$0xf] %vm564, %v563
      $region48: #{basic_block_forward.1} parent=39 // pred_fallthru
        _
      %p566 = scmp.eq.s32.totalorder %s16, 1
      // Predicated region
      $region49: #{basic_block_forward.1} parent=39 // pred_check
        %p567 = pneg %p566
      $region50: #{basic_block_forward.1} parent=39 // pred_check_branch
        %569 = sbr.rel (%p567) target = $region52
      $region51: #{basic_block_forward.1} parent=39 // pred_region
        %v570 = vld [vmem:[#allocation3] sm:$0xf]
        %v571 = vmul.f32 %v570, 0.001953125
        %v572 = vld [vmem:[%s5] sm:$0xff]
        %574 = vset.pattern.permute.xlu0 0
        %575 = vperm.xlu0 %574, %v571
        %v576 = vpop.permute.xlu0 %575
        %v578 = vunpack.c.l.s4 839922192
        %v579 = vunpack.c.0.s8 %v578
        %v580 = vlaneseq
        %v581 = vshrl.u32 %v580, 7
        %v582 = vsub.s32 %v579, %v581
        %v583 = vrot.slane %v576, %v582
        %v585 = vsub.f32 %v572, %v583
        %v586 = vmul.f32 %v585, %v585
        %v587 = vadd.f32 %v586, 0.0
        %v589 = vcombine.high %v587, %v587
        %v591 = vsel %vm237, %v587, 0.0
        %v592 = vsel %vm237, %v589, 0.0
        %v593 = vadd.f32 %v591, %v592
        %594 = vadd.xlane.f32.xlu0 %v593
        %v595 = vpop.xlane.xlu0 %594
        %v596 = vadd.f32 %v595, 0.0
        %s597 = scalar_lea.vmem %s5, 8
        %v598 = vld [vmem:[%s597] sm:$0xff]
        %v599 = vsub.f32 %v598, %v583
        %v600 = vmul.f32 %v599, %v599
        %v601 = vadd.f32 %v600, 0.0
        %v603 = vcombine.high %v601, %v601
        %v605 = vsel %vm237, %v601, 0.0
        %v606 = vsel %vm237, %v603, 0.0
        %v607 = vadd.f32 %v605, %v606
        %608 = vadd.xlane.f32.xlu0 %v607
        %v609 = vpop.xlane.xlu0 %608
        %v610 = vadd.f32 %v596, %v609
        %v611 = vmul.f32 %v610, 0.001953125
        %v612 = vld [vmem:[%s3] sm:$0xf]
        %v613 = vadd.f32 %v611, 1e-05
        %v614 = vrsqrt.pop %v613
        %v615 = vmul.f32 %v612, %v614
        %v616 = vld [vmem:[%s4] sm:$0xf]
        %v617 = vmul.f32 %v571, %v615
        %v618 = vsub.f32 %v616, %v617
        %620 = vset.pattern.permute.xlu0 0
        %621 = vperm.xlu0 %620, %v615
        %v622 = vpop.permute.xlu0 %621
        %v624 = vunpack.c.l.s4 839922192
        %v625 = vunpack.c.0.s8 %v624
        %v626 = vlaneseq
        %v627 = vshrl.u32 %v626, 7
        %v628 = vsub.s32 %v625, %v627
        %v629 = vrot.slane %v622, %v628
        %v631 = vmul.f32 %v572, %v629
        %633 = vset.pattern.permute.xlu0 0
        %634 = vperm.xlu0 %633, %v618
        %v635 = vpop.permute.xlu0 %634
        %v637 = vunpack.c.l.s4 839922192
        %v638 = vunpack.c.0.s8 %v637
        %v639 = vlaneseq
        %v640 = vshrl.u32 %v639, 7
        %v641 = vsub.s32 %v638, %v640
        %v642 = vrot.slane %v635, %v641
        %v644 = vadd.f32 %v631, %v642
        %vm645 = vcmp.ge.f32.partialorder %v644, 0.0
        %v646 = vmul.f32 %v644, 0.1
        %v647 = vsel %vm645, %v644, %v646
        %648 = vst [vmem:[%s5] sm:$0xff] %v647
        %v649 = vld [vmem:[%s597] sm:$0xff]
        %v650 = vmul.f32 %v649, %v629
        %v651 = vadd.f32 %v650, %v642
        %vm652 = vcmp.ge.f32.partialorder %v651, 0.0
        %v653 = vmul.f32 %v651, 0.1
        %v654 = vsel %vm652, %v651, %v653
        %655 = vst [vmem:[%s597] sm:$0xff] %v654
      $region52: #{basic_block_forward.1} parent=39 // pred_fallthru
        _
      // Predicated region
      $region53: #{basic_block_forward.1} parent=39 // pred_check
        %p656 = pneg %p139
      $region54: #{basic_block_forward.1} parent=39 // pred_check_branch
        %658 = sbr.rel (%p656) target = $region56
      $region55: #{basic_block_forward.1} parent=39 // pred_region
        _
      $region56: #{basic_block_forward.1} parent=39 // pred_fallthru
        _
      // Predicated region
      $region57: #{basic_block_forward.1} parent=39 // pred_check
        %p659 = pneg %p139
      $region58: #{basic_block_forward.1} parent=39 // pred_check_branch
        %661 = sbr.rel (%p659) target = $region60
      $region59: #{basic_block_forward.1} parent=39 // pred_region
        _
      $region60: #{basic_block_forward.1} parent=39 // pred_fallthru
        _
    $region40: #{basic_block_forward.1} parent=5 // pred_fallthru
      _
    %p662 = scmp.le.s32.totalorder 2, %s11
    // Predicated region
    $region61: #{basic_block_forward.1} parent=5 // pred_check
      %p663 = pneg %p662
    $region62: #{basic_block_forward.1} parent=5 // pred_check_branch
      %665 = sbr.rel (%p663) target = $region64
    $region63: #{basic_block_forward.1} parent=5 // pred_region
      %s666 = ssub.s32 %s11, 2
    $region64: #{basic_block_forward.1} parent=5 // pred_fallthru
      _
  $region6: #{basic_block_forward.1} parent=0 // loop_footer
    %s15 = sadd.s32 1, %s11
  $region7: #{basic_block_forward.1} parent=0 // loop_footer_branch
    %10 = sbr.rel target = $region3
  $region8: #{basic_block_forward.1} parent=0 // loop_exit
    _

</llo_original>
